<compile_context>
chip_gen: v7x
topology: tpu7x:2x2x1
jax: 0.10.0
libtpu: 0.0.40
codegen_flags: <defaults>
</compile_context>

<pallas_src>
import functools

import jax
import jax.numpy as jnp
from jax import lax
from jax.experimental import pallas as pl
from jax.experimental.pallas import tpu as pltpu


def _mha_fused_kernel(x_ref, wqkv_ref, wp_ref, b_ref, o_ref,
                      *, num_heads, head_size, embed):
    """One batch tile: fused QKV projection, causal attention, concat, proj."""
    H, hs, D = num_heads, head_size, embed
    x = x_ref[...]                                   # (T, D)
    T = x.shape[0]

    # Single lane-dense projection: (T, D) @ (D, 2*H*hs + H*D).
    # Column layout: [ Q (H*hs, pre-scaled by 1/sqrt(hs)) | K (H*hs) | V (H*D) ]
    qkv = jnp.dot(x, wqkv_ref[...], preferred_element_type=jnp.float32)

    q_all = qkv[:, : H * hs]                         # (T, H*hs), already scaled
    k_all = qkv[:, H * hs: 2 * H * hs]               # (T, H*hs)
    v_all = qkv[:, 2 * H * hs:]                      # (T, H*D)

    row = lax.broadcasted_iota(jnp.int32, (T, T), 0)
    col = lax.broadcasted_iota(jnp.int32, (T, T), 1)
    causal = row >= col

    head_outs = []
    for h in range(H):                               # static unroll (H is small)
        q = q_all[:, h * hs:(h + 1) * hs]            # (T, hs)
        k = k_all[:, h * hs:(h + 1) * hs]            # (T, hs)
        v = v_all[:, h * D:(h + 1) * D]              # (T, D)

        # NT matmul: contract last dims of q and k — no in-kernel transpose.
        s = lax.dot_general(q, k, (((1,), (1,)), ((), ())),
                            preferred_element_type=jnp.float32)   # (T, T)
        s = jnp.where(causal, s, -jnp.inf)

        s = s - jnp.max(s, axis=-1, keepdims=True)
        p = jnp.exp(s)
        inv = pl.reciprocal(jnp.sum(p, axis=-1, keepdims=True), approx=True)
        attn = p * inv                               # softmax

        head_outs.append(jnp.dot(attn, v, preferred_element_type=jnp.float32))

    out_cat = jnp.concatenate(head_outs, axis=-1)    # (T, H*D)

    # Output projection (Linear with bias), weight pre-transposed to (H*D, D).
    out = jnp.dot(out_cat, wp_ref[...], preferred_element_type=jnp.float32)
    out = out + b_ref[...]
    o_ref[...] = out.astype(o_ref.dtype)


def multi_head_attention(x, wk, wq, wv, wp, bp):
    """x: (B,T,D); wk/wq: (H,hs,D); wv: (H,D,D); wp: (D,H*D); bp: (D,)."""
    B, T, D = x.shape
    H, hs, _ = wk.shape

    # --- one-time weight prep (pure layout plumbing, outside the kernel) ---
    scale = 1.0 / (hs ** 0.5)
    # (H, out, D) -> (D, H*out), i.e. per-head W^T blocks laid out along lanes.
    wq_t = jnp.transpose(wq, (2, 0, 1)).reshape(D, H * hs) * scale
    wk_t = jnp.transpose(wk, (2, 0, 1)).reshape(D, H * hs)
    wv_t = jnp.transpose(wv, (2, 0, 1)).reshape(D, H * D)
    wqkv = jnp.concatenate([wq_t, wk_t, wv_t], axis=-1)   # (D, 2*H*hs + H*D)
    wp_t = wp.T                                           # (H*D, D)
    bias = bp.reshape(1, D)

    n_qkv = 2 * H * hs + H * D

    return pl.pallas_call(
        functools.partial(_mha_fused_kernel,
                          num_heads=H, head_size=hs, embed=D),
        out_shape=jax.ShapeDtypeStruct((B, T, D), x.dtype),
        grid=(B,),
        in_specs=[
            pl.BlockSpec((None, T, D), lambda b: (b, 0, 0)),      # x tile
            pl.BlockSpec((D, n_qkv), lambda b: (0, 0)),           # fused QKV W
            pl.BlockSpec((H * D, D), lambda b: (0, 0)),           # proj W^T
            pl.BlockSpec((1, D), lambda b: (0, 0)),               # proj bias
        ],
        out_specs=pl.BlockSpec((None, T, D), lambda b: (b, 0, 0)),
        compiler_params=pltpu.CompilerParams(
            dimension_semantics=("parallel",)),
    )(x, wqkv, wp_t, bias)


def _reference(x, wk, wq, wv, wp, bp):
    """Pure-JAX reference mirroring the PyTorch forward, for verification."""
    B, T, D = x.shape
    H, hs, _ = wk.shape
    heads = []
    for h in range(H):
        k = x @ wk[h].T
        q = x @ wq[h].T
        v = x @ wv[h].T
        s = (q @ jnp.swapaxes(k, -2, -1)) / (hs ** 0.5)
        mask = jnp.tril(jnp.ones((T, T), bool))
        s = jnp.where(mask, s, -jnp.inf)
        a = jax.nn.softmax(s, axis=-1)
        heads.append(a @ v)
    out_cat = jnp.concatenate(heads, axis=-1)
    return out_cat @ wp.T + bp


if __name__ == "__main__":
    # Small shapes consistent with the module.
    B, T, D = 2, 8, 32          # batch, seq (== context_window_size), embed_size
    H, hs = 2, 16               # num_heads, head_size

    key = jax.random.PRNGKey(0)
    kx, kk, kq, kv, kp, kb = jax.random.split(key, 6)

    x = jax.random.normal(kx, (B, T, D), dtype=jnp.float32)
    # PyTorch Linear weight layout: (out_features, in_features).
    wk = 0.05 * jax.random.normal(kk, (H, hs, D), dtype=jnp.float32)
    wq = 0.05 * jax.random.normal(kq, (H, hs, D), dtype=jnp.float32)
    wv = 0.05 * jax.random.normal(kv, (H, D, D), dtype=jnp.float32)
    wp = 0.05 * jax.random.normal(kp, (D, H * D), dtype=jnp.float32)
    bp = 0.05 * jax.random.normal(kb, (D,), dtype=jnp.float32)

    out = multi_head_attention(x, wk, wq, wv, wp, bp)
    out = jax.block_until_ready(out)

    ref = _reference(x, wk, wq, wv, wp, bp)
    assert out.shape == (B, T, D)
    # approx=True reciprocal in the softmax → slightly relaxed tolerance.
    assert jnp.allclose(out, ref, atol=2e-3, rtol=2e-3), "mismatch vs reference"

    print("KERNEL_OK")
</pallas_src>

<mosaic_0001>
module attributes {stable_mosaic.version = 11 : i64} {
  func.func @_mha_fused_kernel(%arg0: i32, %arg1: memref<1x8x32xf32, #tpu.memory_space<vmem>>, %arg2: memref<32x128xf32, #tpu.memory_space<vmem>>, %arg3: memref<64x32xf32, #tpu.memory_space<vmem>>, %arg4: memref<1x32xf32, #tpu.memory_space<vmem>>, %arg5: memref<1x8x32xf32, #tpu.memory_space<vmem>>) attributes {dimension_semantics = [#tpu.dimension_semantics<parallel>], iteration_bounds = array<i64: 2>, scalar_prefetch = 0 : i64, scratch_operands = 0 : i64, tpu.core_type = #tpu.core_type<tc>, window_params = [{transform_indices = @transform_0, window_bounds = array<i64: 1, 8, 32>}, {pipeline_mode = #tpu.pipeline_mode<synchronous>, transform_indices = @transform_1, window_bounds = array<i64: 32, 128>}, {pipeline_mode = #tpu.pipeline_mode<synchronous>, transform_indices = @transform_2, window_bounds = array<i64: 64, 32>}, {pipeline_mode = #tpu.pipeline_mode<synchronous>, transform_indices = @transform_3, window_bounds = array<i64: 1, 32>}, {transform_indices = @transform_4, window_bounds = array<i64: 1, 8, 32>}]} {
    %c0 = arith.constant 0 : index
    %c0_0 = arith.constant 0 : index
    %c0_1 = arith.constant 0 : index
    %0 = vector.load %arg1[%c0, %c0_0, %c0_1] : memref<1x8x32xf32, #tpu.memory_space<vmem>>, vector<1x8x32xf32>
    %1 = vector.shape_cast %0 : vector<1x8x32xf32> to vector<8x32xf32>
    %c0_2 = arith.constant 0 : index
    %c0_3 = arith.constant 0 : index
    %2 = vector.load %arg2[%c0_2, %c0_3] : memref<32x128xf32, #tpu.memory_space<vmem>>, vector<32x128xf32>
    %cst = arith.constant dense<0.000000e+00> : vector<8x128xf32>
    %3 = tpu.matmul %1, %2, %cst {dimension_numbers = #tpu.dot_dimension_numbers<[1], [0], [0], [1], [0, 0, 1, 1], [], []>} : vector<8x32xf32>, vector<32x128xf32>, vector<8x128xf32> -> vector<8x128xf32>
    %4 = vector.extract_strided_slice %3 {offsets = [0, 0], sizes = [8, 32], strides = [1, 1]} : vector<8x128xf32> to vector<8x32xf32>
    %5 = vector.extract_strided_slice %3 {offsets = [0, 32], sizes = [8, 32], strides = [1, 1]} : vector<8x128xf32> to vector<8x32xf32>
    %6 = vector.extract_strided_slice %3 {offsets = [0, 64], sizes = [8, 64], strides = [1, 1]} : vector<8x128xf32> to vector<8x64xf32>
    %7 = tpu.iota {dimensions = array<i32: 0>} : vector<8x8xi32>
    %8 = tpu.iota {dimensions = array<i32: 1>} : vector<8x8xi32>
    %9 = arith.cmpi sge, %7, %8 : vector<8x8xi32>
    %10 = vector.extract_strided_slice %4 {offsets = [0, 0], sizes = [8, 16], strides = [1, 1]} : vector<8x32xf32> to vector<8x16xf32>
    %11 = vector.extract_strided_slice %5 {offsets = [0, 0], sizes = [8, 16], strides = [1, 1]} : vector<8x32xf32> to vector<8x16xf32>
    %12 = vector.extract_strided_slice %6 {offsets = [0, 0], sizes = [8, 32], strides = [1, 1]} : vector<8x64xf32> to vector<8x32xf32>
    %cst_4 = arith.constant dense<0.000000e+00> : vector<8x8xf32>
    %13 = tpu.matmul %10, %11, %cst_4 {dimension_numbers = #tpu.dot_dimension_numbers<[1], [1], [0], [0], [0, 0, 1, 0], [], []>} : vector<8x16xf32>, vector<8x16xf32>, vector<8x8xf32> -> vector<8x8xf32>
    %cst_5 = arith.constant 0xFF800000 : f32
    %14 = vector.broadcast %cst_5 : f32 to vector<8x8xf32>
    %15 = arith.select %9, %13, %14 : vector<8x8xi1>, vector<8x8xf32>
    %cst_6 = arith.constant dense<0xFF800000> : vector<8xf32>
    %16 = vector.multi_reduction <maximumf>, %15, %cst_6 [1] : vector<8x8xf32> to vector<8xf32>
    %17 = vector.shape_cast %16 : vector<8xf32> to vector<8x1xf32>
    %18 = vector.broadcast %17 : vector<8x1xf32> to vector<8x8xf32>
    %19 = arith.subf %15, %18 : vector<8x8xf32>
    %20 = math.exp %19 : vector<8x8xf32>
    %cst_7 = arith.constant dense<0.000000e+00> : vector<8xf32>
    %21 = vector.multi_reduction <add>, %20, %cst_7 [1] : vector<8x8xf32> to vector<8xf32>
    %22 = vector.shape_cast %21 : vector<8xf32> to vector<8x1xf32>
    %23 = tpu.reciprocal %22 {approx = true} : vector<8x1xf32> -> vector<8x1xf32>
    %24 = vector.broadcast %23 : vector<8x1xf32> to vector<8x8xf32>
    %25 = arith.mulf %20, %24 : vector<8x8xf32>
    %cst_8 = arith.constant dense<0.000000e+00> : vector<8x32xf32>
    %26 = tpu.matmul %25, %12, %cst_8 {dimension_numbers = #tpu.dot_dimension_numbers<[1], [0], [0], [1], [0, 0, 1, 1], [], []>} : vector<8x8xf32>, vector<8x32xf32>, vector<8x32xf32> -> vector<8x32xf32>
    %27 = vector.extract_strided_slice %4 {offsets = [0, 16], sizes = [8, 16], strides = [1, 1]} : vector<8x32xf32> to vector<8x16xf32>
    %28 = vector.extract_strided_slice %5 {offsets = [0, 16], sizes = [8, 16], strides = [1, 1]} : vector<8x32xf32> to vector<8x16xf32>
    %29 = vector.extract_strided_slice %6 {offsets = [0, 32], sizes = [8, 32], strides = [1, 1]} : vector<8x64xf32> to vector<8x32xf32>
    %cst_9 = arith.constant dense<0.000000e+00> : vector<8x8xf32>
    %30 = tpu.matmul %27, %28, %cst_9 {dimension_numbers = #tpu.dot_dimension_numbers<[1], [1], [0], [0], [0, 0, 1, 0], [], []>} : vector<8x16xf32>, vector<8x16xf32>, vector<8x8xf32> -> vector<8x8xf32>
    %cst_10 = arith.constant 0xFF800000 : f32
    %31 = vector.broadcast %cst_10 : f32 to vector<8x8xf32>
    %32 = arith.select %9, %30, %31 : vector<8x8xi1>, vector<8x8xf32>
    %cst_11 = arith.constant dense<0xFF800000> : vector<8xf32>
    %33 = vector.multi_reduction <maximumf>, %32, %cst_11 [1] : vector<8x8xf32> to vector<8xf32>
    %34 = vector.shape_cast %33 : vector<8xf32> to vector<8x1xf32>
    %35 = vector.broadcast %34 : vector<8x1xf32> to vector<8x8xf32>
    %36 = arith.subf %32, %35 : vector<8x8xf32>
    %37 = math.exp %36 : vector<8x8xf32>
    %cst_12 = arith.constant dense<0.000000e+00> : vector<8xf32>
    %38 = vector.multi_reduction <add>, %37, %cst_12 [1] : vector<8x8xf32> to vector<8xf32>
    %39 = vector.shape_cast %38 : vector<8xf32> to vector<8x1xf32>
    %40 = tpu.reciprocal %39 {approx = true} : vector<8x1xf32> -> vector<8x1xf32>
    %41 = vector.broadcast %40 : vector<8x1xf32> to vector<8x8xf32>
    %42 = arith.mulf %37, %41 : vector<8x8xf32>
    %cst_13 = arith.constant dense<0.000000e+00> : vector<8x32xf32>
    %43 = tpu.matmul %42, %29, %cst_13 {dimension_numbers = #tpu.dot_dimension_numbers<[1], [0], [0], [1], [0, 0, 1, 1], [], []>} : vector<8x8xf32>, vector<8x32xf32>, vector<8x32xf32> -> vector<8x32xf32>
    %44 = tpu.concatenate %26, %43 in 1 : vector<8x32xf32>, vector<8x32xf32> -> vector<8x64xf32>
    %c0_14 = arith.constant 0 : index
    %c0_15 = arith.constant 0 : index
    %45 = vector.load %arg3[%c0_14, %c0_15] : memref<64x32xf32, #tpu.memory_space<vmem>>, vector<64x32xf32>
    %cst_16 = arith.constant dense<0.000000e+00> : vector<8x32xf32>
    %46 = tpu.matmul %44, %45, %cst_16 {dimension_numbers = #tpu.dot_dimension_numbers<[1], [0], [0], [1], [0, 0, 1, 1], [], []>} : vector<8x64xf32>, vector<64x32xf32>, vector<8x32xf32> -> vector<8x32xf32>
    %c0_17 = arith.constant 0 : index
    %c0_18 = arith.constant 0 : index
    %47 = vector.load %arg4[%c0_17, %c0_18] : memref<1x32xf32, #tpu.memory_space<vmem>>, vector<1x32xf32>
    %48 = vector.broadcast %47 : vector<1x32xf32> to vector<8x32xf32>
    %49 = arith.addf %46, %48 : vector<8x32xf32>
    %c0_19 = arith.constant 0 : index
    %c0_20 = arith.constant 0 : index
    %c0_21 = arith.constant 0 : index
    %50 = vector.load %arg5[%c0_19, %c0_20, %c0_21] : memref<1x8x32xf32, #tpu.memory_space<vmem>>, vector<1x8x32xf32>
    %51 = vector.shape_cast %50 : vector<1x8x32xf32> to vector<8x32xf32>
    %52 = vector.shape_cast %49 : vector<8x32xf32> to vector<1x8x32xf32>
    tpu.vector_store %arg5[%c0_19, %c0_20, %c0_21], %52 {strides = array<i32>} : memref<1x8x32xf32, #tpu.memory_space<vmem>>, vector<1x8x32xf32>,
    return
  }
  func.func @transform_0(%arg0: i32) -> (i32, i32, i32) {
    %c0_i32 = arith.constant 0 : i32
    %c0_i32_0 = arith.constant 0 : i32
    %c0_i32_1 = arith.constant 0 : i32
    return %arg0, %c0_i32, %c0_i32_0 : i32, i32, i32
  }
  func.func @transform_1(%arg0: i32) -> (i32, i32) {
    %c0_i32 = arith.constant 0 : i32
    %c0_i32_0 = arith.constant 0 : i32
    %c0_i32_1 = arith.constant 0 : i32
    return %c0_i32, %c0_i32_0 : i32, i32
  }
  func.func @transform_2(%arg0: i32) -> (i32, i32) {
    %c0_i32 = arith.constant 0 : i32
    %c0_i32_0 = arith.constant 0 : i32
    %c0_i32_1 = arith.constant 0 : i32
    return %c0_i32, %c0_i32_0 : i32, i32
  }
  func.func @transform_3(%arg0: i32) -> (i32, i32) {
    %c0_i32 = arith.constant 0 : i32
    %c0_i32_0 = arith.constant 0 : i32
    %c0_i32_1 = arith.constant 0 : i32
    return %c0_i32, %c0_i32_0 : i32, i32
  }
  func.func @transform_4(%arg0: i32) -> (i32, i32, i32) {
    %c0_i32 = arith.constant 0 : i32
    %c0_i32_0 = arith.constant 0 : i32
    %c0_i32_1 = arith.constant 0 : i32
    return %arg0, %c0_i32, %c0_i32_0 : i32, i32, i32
  }
}

</mosaic_0001>

<llo_original>
// kernel: tpu_custom_call.1
$region0: #{tpu_custom_call.1}
  #allocation0 [shape = 'u32[]', space=smem, size = 0x4, offset = 0x4, fixed_abs, tag = 'smem constant byte address 0x4 - core index']
  #allocation1 [shape = 'u32[144,128]{1,0:T(1,128)}', space=vmem, size = 0x12000, scoped, tag = 'internal scratch']
  %s0 = inlined_call_operand.vmem [shape: f32[2,8,32], index: 0, kind: input, shape index: {}]
  %s1 = inlined_call_operand.vmem [shape: f32[32,128], index: 1, kind: input, shape index: {}]
  %s2 = inlined_call_operand.vmem [shape: f32[64,32], index: 2, kind: input, shape index: {}]
  %s3 = inlined_call_operand.vmem [shape: f32[1,32], index: 3, kind: input, shape index: {}]
  %s4 = inlined_call_operand.hbm [shape: f32[2,8,32], index: 4, kind: output, shape index: {}]
  %s5 = sld [smem:[#allocation0]]
  $region49: #{tpu_custom_call.1} parent=0
    _
  %s7 = ssub.s32 1, %s5
  %s8 = scalar_select 0, %s7, %s5
  $region1: #{tpu_custom_call.1} parent=0
    #allocation2 [shape = 'u8[8192]{0}', space=vmem, size = 0x2000, scoped, tag = 'output window, operand 0']
    #allocation3 [shape = 's32[2]{0}', space=sflag, size = 0x8, scoped, tag = 'scoped memory for tpu_custom_call.1']
    %9 = vsyncpa [#allocation3], 0
    %s10 = scalar_lea.sflag [#allocation3], 1
    %11 = vsyncpa %s10, 0
    loop: start=0, step=1, limit=4
    $region2: #{tpu_custom_call.1} parent=1 // loop_pre_header
      _
    $region3: #{tpu_custom_call.1} parent=1 // loop_header
      %s13 = sphi 0, %s17
      %p14 = scmp.ge.s32.totalorder %s13, 4
      %s23 = sphi 0, %s25
      %s26 = sphi 0, %s23
      %s27 = sphi 0, %s26
      %s43 = sphi 0, %s27
      %s47 = sphi 0, %s47
      %s49 = sphi 0, %s47
      %s50 = sphi 0, %s49
      %s64 = sphi 0, %s50
      %s68 = sphi 0, %s68
      %s70 = sphi 0, %s68
      %s71 = sphi 0, %s70
      %s85 = sphi 0, %s71
      %s89 = sphi 0, %s89
      %s91 = sphi 0, %s89
      %s92 = sphi 0, %s91
      %s106 = sphi 0, %s92
      %s112 = sphi 0, %s114
      %s115 = sphi 0, %s112
      %s116 = sphi 0, %s115
      %s132 = sphi 0, %s116
    $region4: #{tpu_custom_call.1} parent=1 // loop_header_branch
      %16 = sbr.rel (%p14) target = $region8
    $region5: #{tpu_custom_call.1} parent=1 // loop_body
      %s18 = ssub.s32 %s13, 1
      %s19 = ssub.s32 %s13, 2
      %s20 = sadd.s32 %s13, 1
      %s21 = ssub.s32 %s13, %s20
      %p22 = scmp.eq.s32.totalorder %s21, 0
      %s24 = sadd.s32 %s23, 1
      %s25 = scalar_select %p22, %s23, %s24
      %p28 = pneg %p22
      %p29 = scmp.eq.s32.totalorder %s13, 1
      %p30 = por %p28, %p29
      %p31 = scmp.ne.s32.totalorder %s23, %s26
      %p32 = scmp.eq.s32.totalorder %s13, 0
      %p33 = por %p31, %p32
      %p34 = scmp.ne.s32.totalorder %s23, %s26
      %p35 = scmp.eq.s32.totalorder %s18, 1
      %p36 = por %p34, %p35
      %p37 = scmp.ne.s32.totalorder %s26, %s27
      %p38 = scmp.eq.s32.totalorder %s18, 0
      %p39 = por %p37, %p38
      %p40 = scmp.ne.s32.totalorder %s26, %s27
      %p41 = scmp.eq.s32.totalorder %s19, 1
      %p42 = por %p40, %p41
      %p44 = scmp.ne.s32.totalorder %s27, %s43
      %p45 = scmp.eq.s32.totalorder %s19, 0
      %p46 = por %p44, %p45
      %s48 = sadd.s32 %s47, 1
      %p51 = scmp.eq.s32.totalorder %s13, 1
      %p52 = scmp.ne.s32.totalorder %s47, %s49
      %p53 = scmp.eq.s32.totalorder %s13, 0
      %p54 = por %p52, %p53
      %p55 = scmp.ne.s32.totalorder %s47, %s49
      %p56 = scmp.eq.s32.totalorder %s18, 1
      %p57 = por %p55, %p56
      %p58 = scmp.ne.s32.totalorder %s49, %s50
      %p59 = scmp.eq.s32.totalorder %s18, 0
      %p60 = por %p58, %p59
      %p61 = scmp.ne.s32.totalorder %s49, %s50
      %p62 = scmp.eq.s32.totalorder %s19, 1
      %p63 = por %p61, %p62
      %p65 = scmp.ne.s32.totalorder %s50, %s64
      %p66 = scmp.eq.s32.totalorder %s19, 0
      %p67 = por %p65, %p66
      %s69 = sadd.s32 %s68, 1
      %p72 = scmp.eq.s32.totalorder %s13, 1
      %p73 = scmp.ne.s32.totalorder %s68, %s70
      %p74 = scmp.eq.s32.totalorder %s13, 0
      %p75 = por %p73, %p74
      %p76 = scmp.ne.s32.totalorder %s68, %s70
      %p77 = scmp.eq.s32.totalorder %s18, 1
      %p78 = por %p76, %p77
      %p79 = scmp.ne.s32.totalorder %s70, %s71
      %p80 = scmp.eq.s32.totalorder %s18, 0
      %p81 = por %p79, %p80
      %p82 = scmp.ne.s32.totalorder %s70, %s71
      %p83 = scmp.eq.s32.totalorder %s19, 1
      %p84 = por %p82, %p83
      %p86 = scmp.ne.s32.totalorder %s71, %s85
      %p87 = scmp.eq.s32.totalorder %s19, 0
      %p88 = por %p86, %p87
      %s90 = sadd.s32 %s89, 1
      %p93 = scmp.eq.s32.totalorder %s13, 1
      %p94 = scmp.ne.s32.totalorder %s89, %s91
      %p95 = scmp.eq.s32.totalorder %s13, 0
      %p96 = por %p94, %p95
      %p97 = scmp.ne.s32.totalorder %s89, %s91
      %p98 = scmp.eq.s32.totalorder %s18, 1
      %p99 = por %p97, %p98
      %p100 = scmp.ne.s32.totalorder %s91, %s92
      %p101 = scmp.eq.s32.totalorder %s18, 0
      %p102 = por %p100, %p101
      %p103 = scmp.ne.s32.totalorder %s91, %s92
      %p104 = scmp.eq.s32.totalorder %s19, 1
      %p105 = por %p103, %p104
      %p107 = scmp.ne.s32.totalorder %s92, %s106
      %p108 = scmp.eq.s32.totalorder %s19, 0
      %p109 = por %p107, %p108
      %s110 = ssub.s32 %s13, %s20
      %p111 = scmp.eq.s32.totalorder %s110, 0
      %s113 = sadd.s32 %s112, 1
      %s114 = scalar_select %p111, %s112, %s113
      %p117 = pneg %p111
      %p118 = scmp.eq.s32.totalorder %s13, 1
      %p119 = por %p117, %p118
      %p120 = scmp.ne.s32.totalorder %s112, %s115
      %p121 = scmp.eq.s32.totalorder %s13, 0
      %p122 = por %p120, %p121
      %p123 = scmp.ne.s32.totalorder %s112, %s115
      %p124 = scmp.eq.s32.totalorder %s18, 1
      %p125 = por %p123, %p124
      %p126 = scmp.ne.s32.totalorder %s115, %s116
      %p127 = scmp.eq.s32.totalorder %s18, 0
      %p128 = por %p126, %p127
      %p129 = scmp.ne.s32.totalorder %s115, %s116
      %p130 = scmp.eq.s32.totalorder %s19, 1
      %p131 = por %p129, %p130
      %p133 = scmp.ne.s32.totalorder %s116, %s132
      %p134 = scmp.eq.s32.totalorder %s19, 0
      %p135 = por %p133, %p134
      %p136 = scmp.le.s32.totalorder 1, %s13
      %p137 = scmp.lt.s32.totalorder %s13, 3
      %p138 = pnand %p136, %p137
      %p139 = pneg %p138
      // Predicated region
      $region9: #{tpu_custom_call.1} parent=5 // pred_check
        _
      $region10: #{tpu_custom_call.1} parent=5 // pred_check_branch
        %141 = sbr.rel (%p138) target = $region12
      $region11: #{tpu_custom_call.1} parent=5 // pred_region
        %s142 = ssub.s32 %s13, 1
        // Predicated region
        $region13: #{tpu_custom_call.1} parent=11 // pred_check
          %p143 = pneg %p60
        $region14: #{tpu_custom_call.1} parent=11 // pred_check_branch
          %145 = sbr.rel (%p143) target = $region16
        $region15: #{tpu_custom_call.1} parent=11 // pred_region
          _
        $region16: #{tpu_custom_call.1} parent=11 // pred_fallthru
          _
        // Predicated region
        $region17: #{tpu_custom_call.1} parent=11 // pred_check
          %p146 = pneg %p81
        $region18: #{tpu_custom_call.1} parent=11 // pred_check_branch
          %148 = sbr.rel (%p146) target = $region20
        $region19: #{tpu_custom_call.1} parent=11 // pred_region
          _
        $region20: #{tpu_custom_call.1} parent=11 // pred_fallthru
          _
        // Predicated region
        $region21: #{tpu_custom_call.1} parent=11 // pred_check
          %p149 = pneg %p102
        $region22: #{tpu_custom_call.1} parent=11 // pred_check_branch
          %151 = sbr.rel (%p149) target = $region24
        $region23: #{tpu_custom_call.1} parent=11 // pred_region
          _
        $region24: #{tpu_custom_call.1} parent=11 // pred_fallthru
          _
      $region12: #{tpu_custom_call.1} parent=5 // pred_fallthru
        _
      %p152 = scmp.lt.s32.totalorder %s13, 2
      // Predicated region
      $region25: #{tpu_custom_call.1} parent=5 // pred_check
        %p153 = pneg %p152
      $region26: #{tpu_custom_call.1} parent=5 // pred_check_branch
        %155 = sbr.rel (%p153) target = $region28
      $region27: #{tpu_custom_call.1} parent=5 // pred_region
        // Predicated region
        $region29: #{tpu_custom_call.1} parent=27 // pred_check
          %p156 = pneg %p33
        $region30: #{tpu_custom_call.1} parent=27 // pred_check_branch
          %158 = sbr.rel (%p156) target = $region32
        $region31: #{tpu_custom_call.1} parent=27 // pred_region
          %p159 = scmp.lt.s32.totalorder %s13, 1
          %s160 = scalar_select %p159, %s13, 1
          %s161 = smul.addr %s160, 8
          %s162 = scalar_lea.vmem %s0, %s161
        $region32: #{tpu_custom_call.1} parent=27 // pred_fallthru
          _
      $region28: #{tpu_custom_call.1} parent=5 // pred_fallthru
        _
      %p163 = scmp.le.s32.totalorder 1, %s13
      %p164 = scmp.lt.s32.totalorder %s13, 3
      %p165 = pnand %p163, %p164
      %p166 = pneg %p165
      // Predicated region
      $region33: #{tpu_custom_call.1} parent=5 // pred_check
        _
      $region34: #{tpu_custom_call.1} parent=5 // pred_check_branch
        %168 = sbr.rel (%p165) target = $region36
      $region35: #{tpu_custom_call.1} parent=5 // pred_region
        %s169 = ssub.s32 %s13, 1
        %p170 = scmp.lt.s32.totalorder %s18, 1
        %s171 = scalar_select %p170, %s18, 1
        %s172 = smul.addr %s171, 8
        %s173 = scalar_lea.vmem %s0, %s172
        %p174 = pneg %p39
        %p175 = pneg %p36
        %p176 = pneg %p60
        %p177 = pneg %p57
        %p178 = pneg %p81
        %p179 = pneg %p78
        %p180 = pneg %p102
        %p181 = pneg %p99
        %p182 = pneg %p128
        %p183 = pneg %p125
        %s184 = sand.u32 %s115, 1
        %s185 = scalar_lea.sflag [#allocation3], %s184
        %s186 = sand.u32 %s115, 1
        %s187 = smul.addr %s186, 8
        %s188 = scalar_lea.vmem [#allocation2], %s187
        %p189 = scmp.lt.s32.totalorder %s18, 1
        %s190 = scalar_select %p189, %s18, 1
        %s191 = smul.addr %s190, 8
        %s192 = scalar_lea.vmem %s0, %s191
        %v193 = vld [vmem:[%s192] sm:$0xff]
        %v194 = vld [vmem:[%s1] sm:$0xff]
        %v195 = vld [vmem:[%s1 + $0x8] sm:$0xff]
        %v196 = vld [vmem:[%s1 + $0x10] sm:$0xff]
        %v197 = vld [vmem:[%s1 + $0x18] sm:$0xff]
        %vm198 = vcmask 261120
        %v200 = vsel %vm198, %v193, 0
        %202 = vmatprep.subr.mxu0 0.0
        %203 = vmatpush1.msra.mxu0 %v194
        %204 = vmatprep.subr.mxu0 0.0
        %205 = vmatpush1.msra.mxu0 %v195
        %206 = vmatprep.subr.mxu0 0.0
        %207 = vmatpush1.msra.mxu0 %v196
        %208 = vmatprep.subr.mxu0 0.0
        %209 = vmatpush1.msra.mxu0 %v197
        %210 = vmatprep.subr.mxu0 0.0
        %211 = vmatpush1.msra.mxu0 0.0
        %212 = vmatprep.subr.mxu0 0.0
        %213 = vmatpush1.msra.mxu0 0.0
        %214 = vmatprep.subr.mxu0 0.0
        %215 = vmatpush1.msra.mxu0 0.0
        %216 = vmatprep.subr.mxu0 0.0
        %217 = vmatpush1.msra.mxu0 0.0
        %218 = vmatprep.subr.mxu0 0.0
        %219 = vmatpush1.msra.mxu0 0.0
        %220 = vmatprep.subr.mxu0 0.0
        %221 = vmatpush1.msra.mxu0 0.0
        %222 = vmatprep.subr.mxu0 0.0
        %223 = vmatpush1.msra.mxu0 0.0
        %224 = vmatprep.subr.mxu0 0.0
        %225 = vmatpush1.msra.mxu0 0.0
        %226 = vmatprep.subr.mxu0 0.0
        %227 = vmatpush1.msra.mxu0 0.0
        %228 = vmatprep.subr.mxu0 0.0
        %229 = vmatpush1.msra.mxu0 0.0
        %230 = vmatprep.subr.mxu0 0.0
        %231 = vmatpush1.msra.mxu0 0.0
        %232 = vmatprep.subr.mxu0 0.0
        %233 = vmatpush1.msra.mxu0 0.0
        %234 = vmatprep.subr.mxu0 0.0
        %235 = vmatpush1.msra.mxu0 0.0
        %236 = vmatprep.subr.mxu0 0.0
        %237 = vmatpush1.msra.mxu0 0.0
        %238 = vmatprep.subr.mxu0 0.0
        %239 = vmatpush1.msra.mxu0 0.0
        %240 = vmatprep.subr.mxu0 0.0
        %241 = vmatpush1.msra.mxu0 0.0
        %242 = vmatprep.subr.mxu0 0.0
        %243 = vmatpush1.msra.mxu0 0.0
        %244 = vmatprep.subr.mxu0 0.0
        %245 = vmatpush1.msra.mxu0 0.0
        %246 = vmatprep.subr.mxu0 0.0
        %247 = vmatpush1.msra.mxu0 0.0
        %248 = vmatprep.subr.mxu0 0.0
        %249 = vmatpush1.msra.mxu0 0.0
        %250 = vmatprep.subr.mxu0 0.0
        %251 = vmatpush1.msra.mxu0 0.0
        %252 = vmatprep.subr.mxu0 0.0
        %253 = vmatpush1.msra.mxu0 0.0
        %254 = vmatprep.subr.mxu0 0.0
        %255 = vmatpush1.msra.mxu0 0.0
        %256 = vmatprep.subr.mxu0 0.0
        %257 = vmatpush1.msra.mxu0 0.0
        %258 = vmatprep.subr.mxu0 0.0
        %259 = vmatpush1.msra.mxu0 0.0
        %260 = vmatprep.subr.mxu0 0.0
        %261 = vmatpush1.msra.mxu0 0.0
        %262 = vmatprep.subr.mxu0 0.0
        %263 = vmatpush1.msra.mxu0 0.0
        %264 = vmatprep.subr.mxu0 0.0
        %265 = vmatpush1.msra.mxu0 0.0
        %266 = vmatprep.mubr.f32.mxu0 0.0
        %267 = vmatmul.mubr.f32.gmra.mrb[0].mxu0 %v200
        %v268 = vpop.f32.mrb[0].mxu0
        %v269 = vadd.f32 0.0, %v268
        %v270 = vpop.f32.mrb[0].mxu0
        %271 = vdwg.mxu0
        %v272 = vlaneseq
        %v273 = vshrl.u32 %v272, 7
        %v274 = vlaneseq
        %v275 = vand.u32 %v274, 127
        %vm276 = vcmp.ge.s32.totalorder %v273, %v275
        %278 = vrot.lane.b32.xlu0 %v269, 96
        %v279 = vpop.permute.xlu0 %278
        %vm280 = vcmask 130048
        %v281 = vsel %vm280, %v269, 0
        %v283 = vsel %vm280, %v279, 0
        %285 = vmatprep.subr.mxu0 0.0
        %286 = vmatpush1.xpose.msra.mxu0 %v283
        %287 = vmatprep.subr.mxu0 0.0
        %288 = vmatpush1.xpose.msra.mxu0 0.0
        %289 = vmatprep.subr.mxu0 0.0
        %290 = vmatpush1.xpose.msra.mxu0 0.0
        %291 = vmatprep.subr.mxu0 0.0
        %292 = vmatpush1.xpose.msra.mxu0 0.0
        %293 = vmatprep.subr.mxu0 0.0
        %294 = vmatpush1.xpose.msra.mxu0 0.0
        %295 = vmatprep.subr.mxu0 0.0
        %296 = vmatpush1.xpose.msra.mxu0 0.0
        %297 = vmatprep.subr.mxu0 0.0
        %298 = vmatpush1.xpose.msra.mxu0 0.0
        %299 = vmatprep.subr.mxu0 0.0
        %300 = vmatpush1.xpose.msra.mxu0 0.0
        %301 = vmatprep.subr.mxu0 0.0
        %302 = vmatpush1.xpose.msra.mxu0 0.0
        %303 = vmatprep.subr.mxu0 0.0
        %304 = vmatpush1.xpose.msra.mxu0 0.0
        %305 = vmatprep.subr.mxu0 0.0
        %306 = vmatpush1.xpose.msra.mxu0 0.0
        %307 = vmatprep.subr.mxu0 0.0
        %308 = vmatpush1.xpose.msra.mxu0 0.0
        %309 = vmatprep.subr.mxu0 0.0
        %310 = vmatpush1.xpose.msra.mxu0 0.0
        %311 = vmatprep.subr.mxu0 0.0
        %312 = vmatpush1.xpose.msra.mxu0 0.0
        %313 = vmatprep.subr.mxu0 0.0
        %314 = vmatpush1.xpose.msra.mxu0 0.0
        %315 = vmatprep.subr.mxu0 0.0
        %316 = vmatpush1.xpose.msra.mxu0 0.0
        %317 = vmatprep.subr.mxu0 0.0
        %318 = vmatpush1.xpose.msra.mxu0 0.0
        %319 = vmatprep.subr.mxu0 0.0
        %320 = vmatpush1.xpose.msra.mxu0 0.0
        %321 = vmatprep.subr.mxu0 0.0
        %322 = vmatpush1.xpose.msra.mxu0 0.0
        %323 = vmatprep.subr.mxu0 0.0
        %324 = vmatpush1.xpose.msra.mxu0 0.0
        %325 = vmatprep.subr.mxu0 0.0
        %326 = vmatpush1.xpose.msra.mxu0 0.0
        %327 = vmatprep.subr.mxu0 0.0
        %328 = vmatpush1.xpose.msra.mxu0 0.0
        %329 = vmatprep.subr.mxu0 0.0
        %330 = vmatpush1.xpose.msra.mxu0 0.0
        %331 = vmatprep.subr.mxu0 0.0
        %332 = vmatpush1.xpose.msra.mxu0 0.0
        %333 = vmatprep.subr.mxu0 0.0
        %334 = vmatpush1.xpose.msra.mxu0 0.0
        %335 = vmatprep.subr.mxu0 0.0
        %336 = vmatpush1.xpose.msra.mxu0 0.0
        %337 = vmatprep.subr.mxu0 0.0
        %338 = vmatpush1.xpose.msra.mxu0 0.0
        %339 = vmatprep.subr.mxu0 0.0
        %340 = vmatpush1.xpose.msra.mxu0 0.0
        %341 = vmatprep.subr.mxu0 0.0
        %342 = vmatpush1.xpose.msra.mxu0 0.0
        %343 = vmatprep.subr.mxu0 0.0
        %344 = vmatpush1.xpose.msra.mxu0 0.0
        %345 = vmatprep.subr.mxu0 0.0
        %346 = vmatpush1.xpose.msra.mxu0 0.0
        %347 = vmatprep.subr.mxu0 0.0
        %348 = vmatpush1.xpose.msra.mxu0 0.0
        %349 = vmatprep.mubr.f32.mxu0 0.0
        %350 = vmatmul.mubr.f32.gmra.mrb[0].mxu0 %v281
        %v351 = vpop.f32.mrb[0].mxu0
        %v352 = vadd.f32 0.0, %v351
        %v353 = vpop.f32.mrb[0].mxu0
        %354 = vdwg.mxu0
        %v355 = vsel %vm276, %v352, -inf
        %vm356 = vcmask 64512
        %v357 = vsel %vm356, %v355, -inf
        %358 = vmax.xlane.f32.xlu0 %v357
        %v359 = vpop.xlane.xlu0 %358
        %v360 = vsub.f32 %v355, %v359
        %v361 = vmul.f32 %v360, 1.442695
        %v362 = vpow.pop %v361
        %v363 = vsel %vm356, %v362, 0.0
        %364 = vadd.xlane.f32.xlu0 %v363
        %v365 = vpop.xlane.xlu0 %364
        %v366 = vrcp.pop %v365
        %v367 = vmul.f32 %v362, %v366
        %368 = vrot.lane.b32.xlu0 %v269, 64
        %v369 = vpop.permute.xlu0 %368
        %v372 = vsel %vm356, %v367, 0
        %374 = vmatprep.subr.mxu0 0.0
        %375 = vmatpush1.msra.mxu0 %v369
        %376 = vmatprep.subr.mxu0 0.0
        %377 = vmatpush1.msra.mxu0 0.0
        %378 = vmatprep.subr.mxu0 0.0
        %379 = vmatpush1.msra.mxu0 0.0
        %380 = vmatprep.subr.mxu0 0.0
        %381 = vmatpush1.msra.mxu0 0.0
        %382 = vmatprep.subr.mxu0 0.0
        %383 = vmatpush1.msra.mxu0 0.0
        %384 = vmatprep.subr.mxu0 0.0
        %385 = vmatpush1.msra.mxu0 0.0
        %386 = vmatprep.subr.mxu0 0.0
        %387 = vmatpush1.msra.mxu0 0.0
        %388 = vmatprep.subr.mxu0 0.0
        %389 = vmatpush1.msra.mxu0 0.0
        %390 = vmatprep.subr.mxu0 0.0
        %391 = vmatpush1.msra.mxu0 0.0
        %392 = vmatprep.subr.mxu0 0.0
        %393 = vmatpush1.msra.mxu0 0.0
        %394 = vmatprep.subr.mxu0 0.0
        %395 = vmatpush1.msra.mxu0 0.0
        %396 = vmatprep.subr.mxu0 0.0
        %397 = vmatpush1.msra.mxu0 0.0
        %398 = vmatprep.subr.mxu0 0.0
        %399 = vmatpush1.msra.mxu0 0.0
        %400 = vmatprep.subr.mxu0 0.0
        %401 = vmatpush1.msra.mxu0 0.0
        %402 = vmatprep.subr.mxu0 0.0
        %403 = vmatpush1.msra.mxu0 0.0
        %404 = vmatprep.subr.mxu0 0.0
        %405 = vmatpush1.msra.mxu0 0.0
        %406 = vmatprep.subr.mxu0 0.0
        %407 = vmatpush1.msra.mxu0 0.0
        %408 = vmatprep.subr.mxu0 0.0
        %409 = vmatpush1.msra.mxu0 0.0
        %410 = vmatprep.subr.mxu0 0.0
        %411 = vmatpush1.msra.mxu0 0.0
        %412 = vmatprep.subr.mxu0 0.0
        %413 = vmatpush1.msra.mxu0 0.0
        %414 = vmatprep.subr.mxu0 0.0
        %415 = vmatpush1.msra.mxu0 0.0
        %416 = vmatprep.subr.mxu0 0.0
        %417 = vmatpush1.msra.mxu0 0.0
        %418 = vmatprep.subr.mxu0 0.0
        %419 = vmatpush1.msra.mxu0 0.0
        %420 = vmatprep.subr.mxu0 0.0
        %421 = vmatpush1.msra.mxu0 0.0
        %422 = vmatprep.subr.mxu0 0.0
        %423 = vmatpush1.msra.mxu0 0.0
        %424 = vmatprep.subr.mxu0 0.0
        %425 = vmatpush1.msra.mxu0 0.0
        %426 = vmatprep.subr.mxu0 0.0
        %427 = vmatpush1.msra.mxu0 0.0
        %428 = vmatprep.subr.mxu0 0.0
        %429 = vmatpush1.msra.mxu0 0.0
        %430 = vmatprep.subr.mxu0 0.0
        %431 = vmatpush1.msra.mxu0 0.0
        %432 = vmatprep.subr.mxu0 0.0
        %433 = vmatpush1.msra.mxu0 0.0
        %434 = vmatprep.subr.mxu0 0.0
        %435 = vmatpush1.msra.mxu0 0.0
        %436 = vmatprep.subr.mxu0 0.0
        %437 = vmatpush1.msra.mxu0 0.0
        %438 = vmatprep.mubr.f32.mxu0 0.0
        %439 = vmatmul.mubr.f32.gmra.mrb[0].mxu0 %v372
        %v440 = vpop.f32.mrb[0].mxu0
        %v441 = vadd.f32 0.0, %v440
        %v442 = vpop.f32.mrb[0].mxu0
        %443 = vdwg.mxu0
        %444 = vrot.lane.b32.xlu0 %v269, 112
        %v445 = vpop.permute.xlu0 %444
        %446 = vrot.lane.b32.xlu0 %v269, 80
        %v447 = vpop.permute.xlu0 %446
        %v448 = vsel %vm280, %v445, 0
        %v450 = vsel %vm280, %v447, 0
        %452 = vmatprep.subr.mxu0 0.0
        %453 = vmatpush1.xpose.msra.mxu0 %v450
        %454 = vmatprep.subr.mxu0 0.0
        %455 = vmatpush1.xpose.msra.mxu0 0.0
        %456 = vmatprep.subr.mxu0 0.0
        %457 = vmatpush1.xpose.msra.mxu0 0.0
        %458 = vmatprep.subr.mxu0 0.0
        %459 = vmatpush1.xpose.msra.mxu0 0.0
        %460 = vmatprep.subr.mxu0 0.0
        %461 = vmatpush1.xpose.msra.mxu0 0.0
        %462 = vmatprep.subr.mxu0 0.0
        %463 = vmatpush1.xpose.msra.mxu0 0.0
        %464 = vmatprep.subr.mxu0 0.0
        %465 = vmatpush1.xpose.msra.mxu0 0.0
        %466 = vmatprep.subr.mxu0 0.0
        %467 = vmatpush1.xpose.msra.mxu0 0.0
        %468 = vmatprep.subr.mxu0 0.0
        %469 = vmatpush1.xpose.msra.mxu0 0.0
        %470 = vmatprep.subr.mxu0 0.0
        %471 = vmatpush1.xpose.msra.mxu0 0.0
        %472 = vmatprep.subr.mxu0 0.0
        %473 = vmatpush1.xpose.msra.mxu0 0.0
        %474 = vmatprep.subr.mxu0 0.0
        %475 = vmatpush1.xpose.msra.mxu0 0.0
        %476 = vmatprep.subr.mxu0 0.0
        %477 = vmatpush1.xpose.msra.mxu0 0.0
        %478 = vmatprep.subr.mxu0 0.0
        %479 = vmatpush1.xpose.msra.mxu0 0.0
        %480 = vmatprep.subr.mxu0 0.0
        %481 = vmatpush1.xpose.msra.mxu0 0.0
        %482 = vmatprep.subr.mxu0 0.0
        %483 = vmatpush1.xpose.msra.mxu0 0.0
        %484 = vmatprep.subr.mxu0 0.0
        %485 = vmatpush1.xpose.msra.mxu0 0.0
        %486 = vmatprep.subr.mxu0 0.0
        %487 = vmatpush1.xpose.msra.mxu0 0.0
        %488 = vmatprep.subr.mxu0 0.0
        %489 = vmatpush1.xpose.msra.mxu0 0.0
        %490 = vmatprep.subr.mxu0 0.0
        %491 = vmatpush1.xpose.msra.mxu0 0.0
        %492 = vmatprep.subr.mxu0 0.0
        %493 = vmatpush1.xpose.msra.mxu0 0.0
        %494 = vmatprep.subr.mxu0 0.0
        %495 = vmatpush1.xpose.msra.mxu0 0.0
        %496 = vmatprep.subr.mxu0 0.0
        %497 = vmatpush1.xpose.msra.mxu0 0.0
        %498 = vmatprep.subr.mxu0 0.0
        %499 = vmatpush1.xpose.msra.mxu0 0.0
        %500 = vmatprep.subr.mxu0 0.0
        %501 = vmatpush1.xpose.msra.mxu0 0.0
        %502 = vmatprep.subr.mxu0 0.0
        %503 = vmatpush1.xpose.msra.mxu0 0.0
        %504 = vmatprep.subr.mxu0 0.0
        %505 = vmatpush1.xpose.msra.mxu0 0.0
        %506 = vmatprep.subr.mxu0 0.0
        %507 = vmatpush1.xpose.msra.mxu0 0.0
        %508 = vmatprep.subr.mxu0 0.0
        %509 = vmatpush1.xpose.msra.mxu0 0.0
        %510 = vmatprep.subr.mxu0 0.0
        %511 = vmatpush1.xpose.msra.mxu0 0.0
        %512 = vmatprep.subr.mxu0 0.0
        %513 = vmatpush1.xpose.msra.mxu0 0.0
        %514 = vmatprep.subr.mxu0 0.0
        %515 = vmatpush1.xpose.msra.mxu0 0.0
        %516 = vmatprep.mubr.f32.mxu0 0.0
        %517 = vmatmul.mubr.f32.gmra.mrb[0].mxu0 %v448
        %v518 = vpop.f32.mrb[0].mxu0
        %v519 = vadd.f32 0.0, %v518
        %v520 = vpop.f32.mrb[0].mxu0
        %521 = vdwg.mxu0
        %v522 = vsel %vm276, %v519, -inf
        %v523 = vsel %vm356, %v522, -inf
        %524 = vmax.xlane.f32.xlu0 %v523
        %v525 = vpop.xlane.xlu0 %524
        %v526 = vsub.f32 %v522, %v525
        %v527 = vmul.f32 %v526, 1.442695
        %v528 = vpow.pop %v527
        %v529 = vsel %vm356, %v528, 0.0
        %530 = vadd.xlane.f32.xlu0 %v529
        %v531 = vpop.xlane.xlu0 %530
        %v532 = vrcp.pop %v531
        %v533 = vmul.f32 %v528, %v532
        %534 = vrot.lane.b32.xlu0 %v269, 32
        %v535 = vpop.permute.xlu0 %534
        %v538 = vsel %vm356, %v533, 0
        %540 = vmatprep.subr.mxu0 0.0
        %541 = vmatpush1.msra.mxu0 %v535
        %542 = vmatprep.subr.mxu0 0.0
        %543 = vmatpush1.msra.mxu0 0.0
        %544 = vmatprep.subr.mxu0 0.0
        %545 = vmatpush1.msra.mxu0 0.0
        %546 = vmatprep.subr.mxu0 0.0
        %547 = vmatpush1.msra.mxu0 0.0
        %548 = vmatprep.subr.mxu0 0.0
        %549 = vmatpush1.msra.mxu0 0.0
        %550 = vmatprep.subr.mxu0 0.0
        %551 = vmatpush1.msra.mxu0 0.0
        %552 = vmatprep.subr.mxu0 0.0
        %553 = vmatpush1.msra.mxu0 0.0
        %554 = vmatprep.subr.mxu0 0.0
        %555 = vmatpush1.msra.mxu0 0.0
        %556 = vmatprep.subr.mxu0 0.0
        %557 = vmatpush1.msra.mxu0 0.0
        %558 = vmatprep.subr.mxu0 0.0
        %559 = vmatpush1.msra.mxu0 0.0
        %560 = vmatprep.subr.mxu0 0.0
        %561 = vmatpush1.msra.mxu0 0.0
        %562 = vmatprep.subr.mxu0 0.0
        %563 = vmatpush1.msra.mxu0 0.0
        %564 = vmatprep.subr.mxu0 0.0
        %565 = vmatpush1.msra.mxu0 0.0
        %566 = vmatprep.subr.mxu0 0.0
        %567 = vmatpush1.msra.mxu0 0.0
        %568 = vmatprep.subr.mxu0 0.0
        %569 = vmatpush1.msra.mxu0 0.0
        %570 = vmatprep.subr.mxu0 0.0
        %571 = vmatpush1.msra.mxu0 0.0
        %572 = vmatprep.subr.mxu0 0.0
        %573 = vmatpush1.msra.mxu0 0.0
        %574 = vmatprep.subr.mxu0 0.0
        %575 = vmatpush1.msra.mxu0 0.0
        %576 = vmatprep.subr.mxu0 0.0
        %577 = vmatpush1.msra.mxu0 0.0
        %578 = vmatprep.subr.mxu0 0.0
        %579 = vmatpush1.msra.mxu0 0.0
        %580 = vmatprep.subr.mxu0 0.0
        %581 = vmatpush1.msra.mxu0 0.0
        %582 = vmatprep.subr.mxu0 0.0
        %583 = vmatpush1.msra.mxu0 0.0
        %584 = vmatprep.subr.mxu0 0.0
        %585 = vmatpush1.msra.mxu0 0.0
        %586 = vmatprep.subr.mxu0 0.0
        %587 = vmatpush1.msra.mxu0 0.0
        %588 = vmatprep.subr.mxu0 0.0
        %589 = vmatpush1.msra.mxu0 0.0
        %590 = vmatprep.subr.mxu0 0.0
        %591 = vmatpush1.msra.mxu0 0.0
        %592 = vmatprep.subr.mxu0 0.0
        %593 = vmatpush1.msra.mxu0 0.0
        %594 = vmatprep.subr.mxu0 0.0
        %595 = vmatpush1.msra.mxu0 0.0
        %596 = vmatprep.subr.mxu0 0.0
        %597 = vmatpush1.msra.mxu0 0.0
        %598 = vmatprep.subr.mxu0 0.0
        %599 = vmatpush1.msra.mxu0 0.0
        %600 = vmatprep.subr.mxu0 0.0
        %601 = vmatpush1.msra.mxu0 0.0
        %602 = vmatprep.subr.mxu0 0.0
        %603 = vmatpush1.msra.mxu0 0.0
        %604 = vmatprep.mubr.f32.mxu0 0.0
        %605 = vmatmul.mubr.f32.gmra.mrb[0].mxu0 %v538
        %v606 = vpop.f32.mrb[0].mxu0
        %v607 = vadd.f32 0.0, %v606
        %v608 = vpop.f32.mrb[0].mxu0
        %609 = vdwg.mxu0
        %611 = vrot.lane.b32.xlu0 %v607, 32
        %v612 = vpop.permute.xlu0 %611
        %v614 = vsel %vm198, %v441, %v612
        %v615 = vld [vmem:[%s2] sm:$0xff]
        %v616 = vld [vmem:[%s2 + $0x8] sm:$0xff]
        %v617 = vld [vmem:[%s2 + $0x10] sm:$0xff]
        %v618 = vld [vmem:[%s2 + $0x18] sm:$0xff]
        %v619 = vld [vmem:[%s2 + $0x20] sm:$0xff]
        %v620 = vld [vmem:[%s2 + $0x28] sm:$0xff]
        %v621 = vld [vmem:[%s2 + $0x30] sm:$0xff]
        %v622 = vld [vmem:[%s2 + $0x38] sm:$0xff]
        %v623 = vld [vmem:[%s3] sm:$0x1]
        %v625 = vlaneseq
        %v626 = vshrl.u32 %v625, 7
        %v627 = vsub.s32 0, %v626
        %v628 = vrot.slane %v623, %v627
        %vm630 = vcmask 523264
        %v632 = vsel %vm630, %v614, 0
        %634 = vmatprep.subr.mxu0 0.0
        %635 = vmatpush1.msra.mxu0 %v615
        %636 = vmatprep.subr.mxu0 0.0
        %637 = vmatpush1.msra.mxu0 %v616
        %638 = vmatprep.subr.mxu0 0.0
        %639 = vmatpush1.msra.mxu0 %v617
        %640 = vmatprep.subr.mxu0 0.0
        %641 = vmatpush1.msra.mxu0 %v618
        %642 = vmatprep.subr.mxu0 0.0
        %643 = vmatpush1.msra.mxu0 %v619
        %644 = vmatprep.subr.mxu0 0.0
        %645 = vmatpush1.msra.mxu0 %v620
        %646 = vmatprep.subr.mxu0 0.0
        %647 = vmatpush1.msra.mxu0 %v621
        %648 = vmatprep.subr.mxu0 0.0
        %649 = vmatpush1.msra.mxu0 %v622
        %650 = vmatprep.subr.mxu0 0.0
        %651 = vmatpush1.msra.mxu0 0.0
        %652 = vmatprep.subr.mxu0 0.0
        %653 = vmatpush1.msra.mxu0 0.0
        %654 = vmatprep.subr.mxu0 0.0
        %655 = vmatpush1.msra.mxu0 0.0
        %656 = vmatprep.subr.mxu0 0.0
        %657 = vmatpush1.msra.mxu0 0.0
        %658 = vmatprep.subr.mxu0 0.0
        %659 = vmatpush1.msra.mxu0 0.0
        %660 = vmatprep.subr.mxu0 0.0
        %661 = vmatpush1.msra.mxu0 0.0
        %662 = vmatprep.subr.mxu0 0.0
        %663 = vmatpush1.msra.mxu0 0.0
        %664 = vmatprep.subr.mxu0 0.0
        %665 = vmatpush1.msra.mxu0 0.0
        %666 = vmatprep.subr.mxu0 0.0
        %667 = vmatpush1.msra.mxu0 0.0
        %668 = vmatprep.subr.mxu0 0.0
        %669 = vmatpush1.msra.mxu0 0.0
        %670 = vmatprep.subr.mxu0 0.0
        %671 = vmatpush1.msra.mxu0 0.0
        %672 = vmatprep.subr.mxu0 0.0
        %673 = vmatpush1.msra.mxu0 0.0
        %674 = vmatprep.subr.mxu0 0.0
        %675 = vmatpush1.msra.mxu0 0.0
        %676 = vmatprep.subr.mxu0 0.0
        %677 = vmatpush1.msra.mxu0 0.0
        %678 = vmatprep.subr.mxu0 0.0
        %679 = vmatpush1.msra.mxu0 0.0
        %680 = vmatprep.subr.mxu0 0.0
        %681 = vmatpush1.msra.mxu0 0.0
        %682 = vmatprep.subr.mxu0 0.0
        %683 = vmatpush1.msra.mxu0 0.0
        %684 = vmatprep.subr.mxu0 0.0
        %685 = vmatpush1.msra.mxu0 0.0
        %686 = vmatprep.subr.mxu0 0.0
        %687 = vmatpush1.msra.mxu0 0.0
        %688 = vmatprep.subr.mxu0 0.0
        %689 = vmatpush1.msra.mxu0 0.0
        %690 = vmatprep.subr.mxu0 0.0
        %691 = vmatpush1.msra.mxu0 0.0
        %692 = vmatprep.subr.mxu0 0.0
        %693 = vmatpush1.msra.mxu0 0.0
        %694 = vmatprep.subr.mxu0 0.0
        %695 = vmatpush1.msra.mxu0 0.0
        %696 = vmatprep.subr.mxu0 0.0
        %697 = vmatpush1.msra.mxu0 0.0
        %698 = vmatprep.mubr.f32.mxu0 0.0
        %699 = vmatmul.mubr.f32.gmra.mrb[0].mxu0 %v632
        %v700 = vpop.f32.mrb[0].mxu0
        %v701 = vadd.f32 %v628, %v700
        %v702 = vpop.f32.mrb[0].mxu0
        %703 = vdwg.mxu0
        %704 = vst.msk [vmem:[%s188] sm:$0xff] %vm198, %v701
        %s705 = sand.u32 %s115, 1
        %s706 = scalar_lea.sflag [#allocation3], %s705
        %s707 = sand.u32 %s115, 1
        %s708 = smul.addr %s707, 8
        %s709 = scalar_lea.vmem [#allocation2], %s708
        // Predicated region
        $region37: #{tpu_custom_call.1} parent=35 // pred_check
          %p710 = pneg %p125
        $region38: #{tpu_custom_call.1} parent=35 // pred_check_branch
          %712 = sbr.rel (%p710) target = $region40
        $region39: #{tpu_custom_call.1} parent=35 // pred_region
          %s714 = ssub.s32 128, 128
          %715 = vsyncadd %s706, %s714
          %s716 = smul.addr %s18, 128
          %s717 = scalar_lea.hbm %s4, %s716
          %s719 = sshll.u32 %s709, 4
          %s720 = int_to_ptr.vmem [resolvable:$true] %s719
          %722 = dma.vmem_to_hbm [thread:$0]  %s720, 128, %s717, %s706
        $region40: #{tpu_custom_call.1} parent=35 // pred_fallthru
          _
      $region36: #{tpu_custom_call.1} parent=5 // pred_fallthru
        _
      %p723 = scmp.le.s32.totalorder 2, %s13
      // Predicated region
      $region41: #{tpu_custom_call.1} parent=5 // pred_check
        %p724 = pneg %p723
      $region42: #{tpu_custom_call.1} parent=5 // pred_check_branch
        %726 = sbr.rel (%p724) target = $region44
      $region43: #{tpu_custom_call.1} parent=5 // pred_region
        %s727 = ssub.s32 %s13, 2
        // Predicated region
        $region45: #{tpu_custom_call.1} parent=43 // pred_check
          %p728 = pneg %p131
        $region46: #{tpu_custom_call.1} parent=43 // pred_check_branch
          %730 = sbr.rel (%p728) target = $region48
        $region47: #{tpu_custom_call.1} parent=43 // pred_region
          %s731 = sand.u32 %s116, 1
          %s732 = scalar_lea.sflag [#allocation3], %s731
          %s733 = sand.u32 %s116, 1
          %s734 = smul.addr %s733, 8
          %s735 = scalar_lea.vmem [#allocation2], %s734
          %736 = dma.done %s732, 128
        $region48: #{tpu_custom_call.1} parent=43 // pred_fallthru
          _
      $region44: #{tpu_custom_call.1} parent=5 // pred_fallthru
        _
    $region6: #{tpu_custom_call.1} parent=1 // loop_footer
      %s17 = sadd.s32 1, %s13
    $region7: #{tpu_custom_call.1} parent=1 // loop_footer_branch
      %12 = sbr.rel target = $region3
    $region8: #{tpu_custom_call.1} parent=1 // loop_exit
      _
    %737 = vsyncpa [#allocation3], 1
    %s738 = scalar_lea.sflag [#allocation3], 1
    %739 = vsyncpa %s738, 1

</llo_original>
